<compile_context>
chip_gen: v7x
topology: tpu7x:2x2x1
jax: 0.10.0
libtpu: 0.0.40
codegen_flags: <defaults>
</compile_context>

<pallas_src>
import math

import jax
import jax.numpy as jnp
from jax.experimental import pallas as pl
from jax.experimental.pallas import tpu as pltpu


def _round_up(x, m):
    return ((x + m - 1) // m) * m


def _head_kernel(x_ref, w1_ref, b1_ref, wc_ref, bc_ref, logits_ref):
    # Task layer: Linear(H -> T), bf16 operands, f32 MXU accumulation, + bias, ReLU.
    h = jnp.dot(x_ref[...], w1_ref[...], preferred_element_type=jnp.float32)
    h = jnp.maximum(h + b1_ref[...], 0.0)          # b1 is (1, T_pad), broadcasts
    # Dropout(p) -> identity in eval mode.
    # Classifier: Linear(T -> L_pad), lane-dense padded output.
    h = h.astype(wc_ref.dtype)
    logits = jnp.dot(h, wc_ref[...], preferred_element_type=jnp.float32)
    logits_ref[...] = logits + bc_ref[...]         # bc is (1, L_pad)


def sequence_classification_head(pooled_output, w1_t, b1, wc_t, bc,
                                 *, block_b=512, compute_dtype=jnp.bfloat16):
    """Runs the fused head kernel.

    Args:
      pooled_output: [B, H] float32
      w1_t:          [H, T] float32  (task Linear weight, transposed to [in, out])
      b1:            [T]    float32
      wc_t:          [T, L] float32  (classifier weight, transposed to [in, out])
      bc:            [L]    float32
    Returns:
      (logits [B, L] float32, None)
    """
    B, H = pooled_output.shape
    Hw, T = w1_t.shape
    Tw, L = wc_t.shape
    assert Hw == H and Tw == T

    # Lane/MXU-friendly feature padding (multiples of 128).
    H_pad = _round_up(H, 128)
    T_pad = _round_up(T, 128)
    L_pad = _round_up(L, 128)

    # Balanced batch tiling: TB multiple of 16 (bf16 sublane packing); for
    # B >= 32 force an even block count >= 2 so v7x's two TensorCores both get
    # work (no-op on single-TC v5e/v6e). No batch padding in HBM -- the last
    # (possibly partial) block is masked by Pallas.
    target_blocks = pl.cdiv(B, block_b)
    if B >= 32:
        target_blocks = max(target_blocks, 2)
        if target_blocks % 2:
            target_blocks += 1
    TB = min(_round_up(pl.cdiv(B, target_blocks), 16), _round_up(block_b, 16))
    num_blocks = pl.cdiv(B, TB)

    # Operands: cast to bf16 only; pad feature dims with jnp.pad only when needed.
    # Zero feature padding is exact: padded H columns hit zero weight rows, padded
    # T columns get zero bias (ReLU(0)=0) and zero classifier rows, padded L
    # columns are sliced off below. Unpadded batch rows in the last partial block
    # may read garbage but their output rows are masked on writeback.
    x = pooled_output.astype(compute_dtype)
    if H_pad != H:
        x = jnp.pad(x, ((0, 0), (0, H_pad - H)))

    w1p = w1_t.astype(compute_dtype)
    if (H_pad, T_pad) != (H, T):
        w1p = jnp.pad(w1p, ((0, H_pad - H), (0, T_pad - T)))
    b1p = b1.reshape(1, T).astype(jnp.float32)
    if T_pad != T:
        b1p = jnp.pad(b1p, ((0, 0), (0, T_pad - T)))

    wcp = wc_t.astype(compute_dtype)
    if (T_pad, L_pad) != (T, L):
        wcp = jnp.pad(wcp, ((0, T_pad - T), (0, L_pad - L)))
    bcp = bc.reshape(1, L).astype(jnp.float32)
    if L_pad != L:
        bcp = jnp.pad(bcp, ((0, 0), (0, L_pad - L)))

    itemsize = jnp.dtype(compute_dtype).itemsize

    cost = pl.CostEstimate(
        flops=2 * B * H_pad * T_pad + 2 * B * T_pad * L_pad,
        transcendentals=0,
        bytes_accessed=(B * H_pad * itemsize                      # x
                        + (H_pad * T_pad + T_pad * L_pad) * itemsize  # weights
                        + (T_pad + L_pad) * 4                     # biases
                        + B * L_pad * 4))                         # logits

    def _run(single_buffer_weights):
        # Constant-index_map operands: request a single VMEM buffer (no double
        # buffering) -- they are DMA'd once and stay resident.
        wmode = ({"pipeline_mode": pl.Buffered(1)}
                 if single_buffer_weights else {})

        grid_spec = pl.GridSpec(
            grid=(num_blocks,),
            in_specs=[
                pl.BlockSpec((TB, H_pad), lambda i: (i, 0)),            # x: batch-tiled
                pl.BlockSpec((H_pad, T_pad), lambda i: (0, 0), **wmode),  # w1
                pl.BlockSpec((1, T_pad), lambda i: (0, 0), **wmode),      # b1
                pl.BlockSpec((T_pad, L_pad), lambda i: (0, 0), **wmode),  # wc
                pl.BlockSpec((1, L_pad), lambda i: (0, 0), **wmode),      # bc
            ],
            out_specs=pl.BlockSpec((TB, L_pad), lambda i: (i, 0)),
        )

        # Explicit VMEM budget: weights * buffer_count + double-buffered x / out
        # tiles + f32 activation temp, with ~25% headroom; floored at the default
        # scoped limit and capped at v7x's 64 MiB physical VMEM.
        wbuf = 1 if single_buffer_weights else 2
        weight_bytes = ((H_pad * T_pad + T_pad * L_pad) * itemsize
                        + (T_pad + L_pad) * 4) * wbuf
        tile_bytes = (2 * TB * H_pad * itemsize      # x double buffer
                      + 2 * TB * L_pad * 4           # out double buffer
                      + TB * T_pad * 4)              # intermediate activation
        vmem_limit = int(min(64 << 20,
                             max(32 << 20, (weight_bytes + tile_bytes) * 5 // 4)))

        return pl.pallas_call(
            _head_kernel,
            out_shape=jax.ShapeDtypeStruct((B, L_pad), jnp.float32),
            grid_spec=grid_spec,
            compiler_params=pltpu.CompilerParams(
                dimension_semantics=("parallel",),   # megacore batch sharding
                vmem_limit_bytes=vmem_limit,
            ),
            cost_estimate=cost,
        )(x, w1p, b1p, wcp, bcp)

    try:
        logits_pad = _run(True)
    except Exception:
        # Some JAX versions reject Buffered(1); fall back to default buffering.
        logits_pad = _run(False)

    logits = logits_pad[:, :L] if L_pad != L else logits_pad
    return logits, None


def _xavier_normal(key, shape_out_in, gain):
    # Matches nn.init.xavier_normal_ on a (out_features, in_features) weight.
    fan_out, fan_in = shape_out_in
    std = gain * math.sqrt(2.0 / (fan_in + fan_out))
    return std * jax.random.normal(key, shape_out_in, dtype=jnp.float32)


def _reference(pooled_output, w1_t, b1, wc_t, bc, compute_dtype=jnp.bfloat16):
    # Same bf16 quantization of operands as the kernel, f32 accumulation.
    xq = pooled_output.astype(compute_dtype).astype(jnp.float32)
    w1q = w1_t.astype(compute_dtype).astype(jnp.float32)
    wcq = wc_t.astype(compute_dtype).astype(jnp.float32)
    h = jnp.maximum(xq @ w1q + b1.reshape(1, -1), 0.0)
    h = h.astype(compute_dtype).astype(jnp.float32)
    return h @ wcq + bc.reshape(1, -1)


if __name__ == "__main__":
    B = 2            # batch
    H = 32           # hidden_size (pooled_output feature dim)
    T = 64           # task layer out_features
    L = 8            # num_labels

    key = jax.random.PRNGKey(0)
    k_x, k_w1, k_b1, k_wc, k_bc = jax.random.split(key, 5)

    pooled_output = jax.random.normal(k_x, (B, H), dtype=jnp.float32)

    # Task Linear(H -> T): xavier_normal(gain=1.43) weight, uniform(-1.43, 1.43) bias.
    w1 = _xavier_normal(k_w1, (T, H), gain=1.43)               # (out, in) like torch
    b1 = jax.random.uniform(k_b1, (T,), jnp.float32, -1.43, 1.43)
    # Classifier Linear(T -> L): same init scheme.
    wc = _xavier_normal(k_wc, (L, T), gain=1.43)
    bc = jax.random.uniform(k_bc, (L,), jnp.float32, -1.43, 1.43)

    # Transpose weights to [in, out] for the kernel (x @ W + b == x @ weight.T + bias).
    w1_t = w1.T
    wc_t = wc.T

    logits, loss = sequence_classification_head(pooled_output, w1_t, b1, wc_t, bc)
    logits = jax.block_until_ready(logits)

    ref = _reference(pooled_output, w1_t, b1, wc_t, bc)
    assert logits.shape == (B, L)
    assert loss is None
    assert jnp.allclose(logits, ref, atol=2e-3, rtol=2e-3), "mismatch vs reference"

    print("KERNEL_OK")
</pallas_src>

<mosaic_0001>
module attributes {stable_mosaic.version = 11 : i64} {
  func.func @_head_kernel(%arg0: i32, %arg1: memref<16x128xbf16, #tpu.memory_space<vmem>>, %arg2: memref<128x128xbf16, #tpu.memory_space<vmem>>, %arg3: memref<1x128xf32, #tpu.memory_space<vmem>>, %arg4: memref<128x128xbf16, #tpu.memory_space<vmem>>, %arg5: memref<1x128xf32, #tpu.memory_space<vmem>>, %arg6: memref<16x128xf32, #tpu.memory_space<vmem>>) attributes {dimension_semantics = [#tpu.dimension_semantics<parallel>], iteration_bounds = array<i64: 1>, scalar_prefetch = 0 : i64, scratch_operands = 0 : i64, tpu.core_type = #tpu.core_type<tc>, window_params = [{transform_indices = @transform_0, window_bounds = array<i64: 16, 128>}, {pipeline_mode = #tpu.pipeline_mode<synchronous>, transform_indices = @transform_1, window_bounds = array<i64: 128, 128>}, {pipeline_mode = #tpu.pipeline_mode<synchronous>, transform_indices = @transform_2, window_bounds = array<i64: 1, 128>}, {pipeline_mode = #tpu.pipeline_mode<synchronous>, transform_indices = @transform_3, window_bounds = array<i64: 128, 128>}, {pipeline_mode = #tpu.pipeline_mode<synchronous>, transform_indices = @transform_4, window_bounds = array<i64: 1, 128>}, {transform_indices = @transform_5, window_bounds = array<i64: 16, 128>}]} {
    %c0 = arith.constant 0 : index
    %c0_0 = arith.constant 0 : index
    %0 = vector.load %arg1[%c0, %c0_0] : memref<16x128xbf16, #tpu.memory_space<vmem>>, vector<16x128xbf16>
    %c0_1 = arith.constant 0 : index
    %c0_2 = arith.constant 0 : index
    %1 = vector.load %arg2[%c0_1, %c0_2] : memref<128x128xbf16, #tpu.memory_space<vmem>>, vector<128x128xbf16>
    %cst = arith.constant dense<0.000000e+00> : vector<16x128xf32>
    %2 = tpu.matmul %0, %1, %cst {dimension_numbers = #tpu.dot_dimension_numbers<[1], [0], [0], [1], [0, 0, 1, 1], [], []>} : vector<16x128xbf16>, vector<128x128xbf16>, vector<16x128xf32> -> vector<16x128xf32>
    %c0_3 = arith.constant 0 : index
    %c0_4 = arith.constant 0 : index
    %3 = vector.load %arg3[%c0_3, %c0_4] : memref<1x128xf32, #tpu.memory_space<vmem>>, vector<1x128xf32>
    %4 = vector.broadcast %3 : vector<1x128xf32> to vector<16x128xf32>
    %5 = arith.addf %2, %4 : vector<16x128xf32>
    %cst_5 = arith.constant 0.000000e+00 : f32
    %6 = vector.broadcast %cst_5 : f32 to vector<16x128xf32>
    %7 = arith.maximumf %5, %6 : vector<16x128xf32>
    %8 = arith.truncf %7 : vector<16x128xf32> to vector<16x128xbf16>
    %c0_6 = arith.constant 0 : index
    %c0_7 = arith.constant 0 : index
    %9 = vector.load %arg4[%c0_6, %c0_7] : memref<128x128xbf16, #tpu.memory_space<vmem>>, vector<128x128xbf16>
    %cst_8 = arith.constant dense<0.000000e+00> : vector<16x128xf32>
    %10 = tpu.matmul %8, %9, %cst_8 {dimension_numbers = #tpu.dot_dimension_numbers<[1], [0], [0], [1], [0, 0, 1, 1], [], []>} : vector<16x128xbf16>, vector<128x128xbf16>, vector<16x128xf32> -> vector<16x128xf32>
    %c0_9 = arith.constant 0 : index
    %c0_10 = arith.constant 0 : index
    %11 = vector.load %arg5[%c0_9, %c0_10] : memref<1x128xf32, #tpu.memory_space<vmem>>, vector<1x128xf32>
    %12 = vector.broadcast %11 : vector<1x128xf32> to vector<16x128xf32>
    %13 = arith.addf %10, %12 : vector<16x128xf32>
    %c0_11 = arith.constant 0 : index
    %c0_12 = arith.constant 0 : index
    %14 = vector.load %arg6[%c0_11, %c0_12] : memref<16x128xf32, #tpu.memory_space<vmem>>, vector<16x128xf32>
    tpu.vector_store %arg6[%c0_11, %c0_12], %13 {strides = array<i32>} : memref<16x128xf32, #tpu.memory_space<vmem>>, vector<16x128xf32>,
    return
  }
  func.func @transform_0(%arg0: i32) -> (i32, i32) {
    %c0_i32 = arith.constant 0 : i32
    %c0_i32_0 = arith.constant 0 : i32
    return %arg0, %c0_i32 : i32, i32
  }
  func.func @transform_1(%arg0: i32) -> (i32, i32) {
    %c0_i32 = arith.constant 0 : i32
    %c0_i32_0 = arith.constant 0 : i32
    %c0_i32_1 = arith.constant 0 : i32
    return %c0_i32, %c0_i32_0 : i32, i32
  }
  func.func @transform_2(%arg0: i32) -> (i32, i32) {
    %c0_i32 = arith.constant 0 : i32
    %c0_i32_0 = arith.constant 0 : i32
    %c0_i32_1 = arith.constant 0 : i32
    return %c0_i32, %c0_i32_0 : i32, i32
  }
  func.func @transform_3(%arg0: i32) -> (i32, i32) {
    %c0_i32 = arith.constant 0 : i32
    %c0_i32_0 = arith.constant 0 : i32
    %c0_i32_1 = arith.constant 0 : i32
    return %c0_i32, %c0_i32_0 : i32, i32
  }
  func.func @transform_4(%arg0: i32) -> (i32, i32) {
    %c0_i32 = arith.constant 0 : i32
    %c0_i32_0 = arith.constant 0 : i32
    %c0_i32_1 = arith.constant 0 : i32
    return %c0_i32, %c0_i32_0 : i32, i32
  }
  func.func @transform_5(%arg0: i32) -> (i32, i32) {
    %c0_i32 = arith.constant 0 : i32
    %c0_i32_0 = arith.constant 0 : i32
    return %arg0, %c0_i32 : i32, i32
  }
}

module attributes {stable_mosaic.version = 11 : i64} {
  func.func @_head_kernel(%arg0: i32, %arg1: memref<16x128xbf16, #tpu.memory_space<vmem>>, %arg2: memref<128x128xbf16, #tpu.memory_space<vmem>>, %arg3: memref<1x128xf32, #tpu.memory_space<vmem>>, %arg4: memref<128x128xbf16, #tpu.memory_space<vmem>>, %arg5: memref<1x128xf32, #tpu.memory_space<vmem>>, %arg6: memref<16x128xf32, #tpu.memory_space<vmem>>) attributes {dimension_semantics = [#tpu.dimension_semantics<parallel>], iteration_bounds = array<i64: 1>, scalar_prefetch = 0 : i64, scratch_operands = 0 : i64, tpu.core_type = #tpu.core_type<tc>, window_params = [{transform_indices = @transform_0, window_bounds = array<i64: 16, 128>}, {pipeline_mode = #tpu.pipeline_mode<synchronous>, transform_indices = @transform_1, window_bounds = array<i64: 128, 128>}, {pipeline_mode = #tpu.pipeline_mode<synchronous>, transform_indices = @transform_2, window_bounds = array<i64: 1, 128>}, {pipeline_mode = #tpu.pipeline_mode<synchronous>, transform_indices = @transform_3, window_bounds = array<i64: 128, 128>}, {pipeline_mode = #tpu.pipeline_mode<synchronous>, transform_indices = @transform_4, window_bounds = array<i64: 1, 128>}, {transform_indices = @transform_5, window_bounds = array<i64: 16, 128>}]} {
    %c0 = arith.constant 0 : index
    %c0_0 = arith.constant 0 : index
    %0 = vector.load %arg1[%c0, %c0_0] : memref<16x128xbf16, #tpu.memory_space<vmem>>, vector<16x128xbf16>
    %c0_1 = arith.constant 0 : index
    %c0_2 = arith.constant 0 : index
    %1 = vector.load %arg2[%c0_1, %c0_2] : memref<128x128xbf16, #tpu.memory_space<vmem>>, vector<128x128xbf16>
    %cst = arith.constant dense<0.000000e+00> : vector<16x128xf32>
    %2 = tpu.matmul %0, %1, %cst {dimension_numbers = #tpu.dot_dimension_numbers<[1], [0], [0], [1], [0, 0, 1, 1], [], []>} : vector<16x128xbf16>, vector<128x128xbf16>, vector<16x128xf32> -> vector<16x128xf32>
    %c0_3 = arith.constant 0 : index
    %c0_4 = arith.constant 0 : index
    %3 = vector.load %arg3[%c0_3, %c0_4] : memref<1x128xf32, #tpu.memory_space<vmem>>, vector<1x128xf32>
    %4 = vector.broadcast %3 : vector<1x128xf32> to vector<16x128xf32>
    %5 = arith.addf %2, %4 : vector<16x128xf32>
    %cst_5 = arith.constant 0.000000e+00 : f32
    %6 = vector.broadcast %cst_5 : f32 to vector<16x128xf32>
    %7 = arith.maximumf %5, %6 : vector<16x128xf32>
    %8 = arith.truncf %7 : vector<16x128xf32> to vector<16x128xbf16>
    %c0_6 = arith.constant 0 : index
    %c0_7 = arith.constant 0 : index
    %9 = vector.load %arg4[%c0_6, %c0_7] : memref<128x128xbf16, #tpu.memory_space<vmem>>, vector<128x128xbf16>
    %cst_8 = arith.constant dense<0.000000e+00> : vector<16x128xf32>
    %10 = tpu.matmul %8, %9, %cst_8 {dimension_numbers = #tpu.dot_dimension_numbers<[1], [0], [0], [1], [0, 0, 1, 1], [], []>} : vector<16x128xbf16>, vector<128x128xbf16>, vector<16x128xf32> -> vector<16x128xf32>
    %c0_9 = arith.constant 0 : index
    %c0_10 = arith.constant 0 : index
    %11 = vector.load %arg5[%c0_9, %c0_10] : memref<1x128xf32, #tpu.memory_space<vmem>>, vector<1x128xf32>
    %12 = vector.broadcast %11 : vector<1x128xf32> to vector<16x128xf32>
    %13 = arith.addf %10, %12 : vector<16x128xf32>
    %c0_11 = arith.constant 0 : index
    %c0_12 = arith.constant 0 : index
    %14 = vector.load %arg6[%c0_11, %c0_12] : memref<16x128xf32, #tpu.memory_space<vmem>>, vector<16x128xf32>
    tpu.vector_store %arg6[%c0_11, %c0_12], %13 {strides = array<i32>} : memref<16x128xf32, #tpu.memory_space<vmem>>, vector<16x128xf32>,
    return
  }
  func.func @transform_0(%arg0: i32) -> (i32, i32) {
    %c0_i32 = arith.constant 0 : i32
    %c0_i32_0 = arith.constant 0 : i32
    return %arg0, %c0_i32 : i32, i32
  }
  func.func @transform_1(%arg0: i32) -> (i32, i32) {
    %c0_i32 = arith.constant 0 : i32
    %c0_i32_0 = arith.constant 0 : i32
    %c0_i32_1 = arith.constant 0 : i32
    return %c0_i32, %c0_i32_0 : i32, i32
  }
  func.func @transform_2(%arg0: i32) -> (i32, i32) {
    %c0_i32 = arith.constant 0 : i32
    %c0_i32_0 = arith.constant 0 : i32
    %c0_i32_1 = arith.constant 0 : i32
    return %c0_i32, %c0_i32_0 : i32, i32
  }
  func.func @transform_3(%arg0: i32) -> (i32, i32) {
    %c0_i32 = arith.constant 0 : i32
    %c0_i32_0 = arith.constant 0 : i32
    %c0_i32_1 = arith.constant 0 : i32
    return %c0_i32, %c0_i32_0 : i32, i32
  }
  func.func @transform_4(%arg0: i32) -> (i32, i32) {
    %c0_i32 = arith.constant 0 : i32
    %c0_i32_0 = arith.constant 0 : i32
    %c0_i32_1 = arith.constant 0 : i32
    return %c0_i32, %c0_i32_0 : i32, i32
  }
  func.func @transform_5(%arg0: i32) -> (i32, i32) {
    %c0_i32 = arith.constant 0 : i32
    %c0_i32_0 = arith.constant 0 : i32
    return %arg0, %c0_i32 : i32, i32
  }
}

</mosaic_0001>

<llo_original>
// kernel: tpu_custom_call.1
$region0: #{tpu_custom_call.1}
  #allocation0 [shape = 'u32[]', space=smem, size = 0x4, offset = 0x4, fixed_abs, tag = 'smem constant byte address 0x4 - core index']
  #allocation1 [shape = 'u32[144,128]{1,0:T(1,128)}', space=vmem, size = 0x12000, scoped, tag = 'internal scratch']
  %s0 = inlined_call_operand.hbm [shape: bf16[2,128], index: 0, kind: input, shape index: {}]
  %s1 = inlined_call_operand.hbm [shape: bf16[128,128], index: 1, kind: input, shape index: {}]
  %s2 = inlined_call_operand.vmem [shape: f32[1,128], index: 2, kind: input, shape index: {}]
  %s3 = inlined_call_operand.hbm [shape: bf16[128,128], index: 3, kind: input, shape index: {}]
  %s4 = inlined_call_operand.vmem [shape: f32[1,128], index: 4, kind: input, shape index: {}]
  %s5 = inlined_call_operand.hbm [shape: f32[2,128], index: 5, kind: output, shape index: {}]
  %s6 = sld [smem:[#allocation0]]
  $region42: #{tpu_custom_call.1} parent=0
    _
  %s8 = ssub.s32 1, %s6
  %s9 = scalar_select 0, %s8, %s6
  $region1: #{tpu_custom_call.1} parent=0
    #allocation2 [shape = 'u8[4096]{0}', space=vmem, size = 0x1000, scoped, tag = 'input window, operand 0, single buffered']
    #allocation3 [shape = 's32[1]{0}', space=sflag, size = 0x4, scoped, tag = 'scoped memory for tpu_custom_call.1']
    #allocation4 [shape = 's32[1]{0}', space=sflag, size = 0x4, scoped, tag = 'scoped memory for tpu_custom_call.1']
    #allocation5 [shape = 'u8[32768]{0}', space=vmem, size = 0x8000, scoped, tag = 'input window, operand 1, single buffered']
    #allocation6 [shape = 's32[1]{0}', space=sflag, size = 0x4, scoped, tag = 'scoped memory for tpu_custom_call.1']
    #allocation7 [shape = 'u8[32768]{0}', space=vmem, size = 0x8000, scoped, tag = 'input window, operand 3, single buffered']
    #allocation8 [shape = 'u8[8192]{0}', space=vmem, size = 0x2000, scoped, tag = 'output window, operand 0, single buffered']
    %10 = vsyncpa [#allocation3], 0
    %11 = vsyncpa [#allocation6], 0
    %12 = vsyncpa [#allocation4], 0
    // Predicated region
    $region2: #{tpu_custom_call.1} parent=1 // pred_check
      _
    $region3: #{tpu_custom_call.1} parent=1 // pred_check_branch
      %14 = sbr.rel (0) target = $region5
    $region4: #{tpu_custom_call.1} parent=1 // pred_region
      %s16 = ssub.s32 128, 16
      %17 = vsyncadd [#allocation3], %s16
      %s18 = sshll.u32 [#allocation2], 4
      %s19 = int_to_ptr.vmem [resolvable:$true] %s18
      %24 = dma.hbm_to_vmem [thread:$0]  %s0, 16, %s19, [#allocation3], 16, 16, 1
    $region5: #{tpu_custom_call.1} parent=1 // pred_fallthru
      _
    // Predicated region
    $region6: #{tpu_custom_call.1} parent=1 // pred_check
      _
    $region7: #{tpu_custom_call.1} parent=1 // pred_check_branch
      %26 = sbr.rel (0) target = $region9
    $region8: #{tpu_custom_call.1} parent=1 // pred_region
      %s28 = ssub.s32 1024, 1024
      %29 = vsyncadd [#allocation6], %s28
      %s30 = sshll.u32 [#allocation5], 4
      %s31 = int_to_ptr.vmem [resolvable:$true] %s30
      %36 = dma.hbm_to_vmem [thread:$0]  %s1, 1024, %s31, [#allocation6], 64, 64, 4
    $region9: #{tpu_custom_call.1} parent=1 // pred_fallthru
      _
    // Predicated region
    $region10: #{tpu_custom_call.1} parent=1 // pred_check
      _
    $region11: #{tpu_custom_call.1} parent=1 // pred_check_branch
      %38 = sbr.rel (0) target = $region13
    $region12: #{tpu_custom_call.1} parent=1 // pred_region
      _
    $region13: #{tpu_custom_call.1} parent=1 // pred_fallthru
      _
    // Predicated region
    $region14: #{tpu_custom_call.1} parent=1 // pred_check
      _
    $region15: #{tpu_custom_call.1} parent=1 // pred_check_branch
      %40 = sbr.rel (0) target = $region17
    $region16: #{tpu_custom_call.1} parent=1 // pred_region
      %s42 = ssub.s32 1024, 1024
      %43 = vsyncadd [#allocation6], %s42
      %s44 = sshll.u32 [#allocation7], 4
      %s45 = int_to_ptr.vmem [resolvable:$true] %s44
      %50 = dma.hbm_to_vmem [thread:$0]  %s3, 1024, %s45, [#allocation6], 64, 64, 4
    $region17: #{tpu_custom_call.1} parent=1 // pred_fallthru
      _
    // Predicated region
    $region18: #{tpu_custom_call.1} parent=1 // pred_check
      _
    $region19: #{tpu_custom_call.1} parent=1 // pred_check_branch
      %52 = sbr.rel (0) target = $region21
    $region20: #{tpu_custom_call.1} parent=1 // pred_region
      _
    $region21: #{tpu_custom_call.1} parent=1 // pred_fallthru
      _
    // Predicated region
    $region22: #{tpu_custom_call.1} parent=1 // pred_check
      _
    $region23: #{tpu_custom_call.1} parent=1 // pred_check_branch
      %54 = sbr.rel (0) target = $region25
    $region24: #{tpu_custom_call.1} parent=1 // pred_region
      %55 = dma.done [#allocation3], 128
    $region25: #{tpu_custom_call.1} parent=1 // pred_fallthru
      _
    // Predicated region
    $region26: #{tpu_custom_call.1} parent=1 // pred_check
      _
    $region27: #{tpu_custom_call.1} parent=1 // pred_check_branch
      %57 = sbr.rel (0) target = $region29
    $region28: #{tpu_custom_call.1} parent=1 // pred_region
      %58 = dma.done [#allocation6], 1024
    $region29: #{tpu_custom_call.1} parent=1 // pred_fallthru
      _
    // Predicated region
    $region30: #{tpu_custom_call.1} parent=1 // pred_check
      _
    $region31: #{tpu_custom_call.1} parent=1 // pred_check_branch
      %60 = sbr.rel (0) target = $region33
    $region32: #{tpu_custom_call.1} parent=1 // pred_region
      %61 = dma.done [#allocation6], 1024
    $region33: #{tpu_custom_call.1} parent=1 // pred_fallthru
      _
    %v63 = vld [vmem:[#allocation2] sm:$0x1]
    %v64 = vld [vmem:[#allocation2 + $0x1] sm:$0x1]
    %v65 = vld [vmem:[#allocation2 + $0x2] sm:$0x1]
    %v66 = vld [vmem:[#allocation2 + $0x3] sm:$0x1]
    %v67 = vld [vmem:[#allocation2 + $0x4] sm:$0x1]
    %v68 = vld [vmem:[#allocation2 + $0x5] sm:$0x1]
    %v69 = vld [vmem:[#allocation2 + $0x6] sm:$0x1]
    %v70 = vld [vmem:[#allocation2 + $0x7] sm:$0x1]
    %v71 = vld [vmem:[#allocation5] sm:$0xf]
    %v72 = vld [vmem:[#allocation5 + $0x4] sm:$0xf]
    %v73 = vld [vmem:[#allocation5 + $0x8] sm:$0xf]
    %v74 = vld [vmem:[#allocation5 + $0xc] sm:$0xf]
    %v75 = vld [vmem:[#allocation5 + $0x10] sm:$0xf]
    %v76 = vld [vmem:[#allocation5 + $0x14] sm:$0xf]
    %v77 = vld [vmem:[#allocation5 + $0x18] sm:$0xf]
    %v78 = vld [vmem:[#allocation5 + $0x1c] sm:$0xf]
    %v79 = vld [vmem:[#allocation5 + $0x20] sm:$0xf]
    %v80 = vld [vmem:[#allocation5 + $0x24] sm:$0xf]
    %v81 = vld [vmem:[#allocation5 + $0x28] sm:$0xf]
    %v82 = vld [vmem:[#allocation5 + $0x2c] sm:$0xf]
    %v83 = vld [vmem:[#allocation5 + $0x30] sm:$0xf]
    %v84 = vld [vmem:[#allocation5 + $0x34] sm:$0xf]
    %v85 = vld [vmem:[#allocation5 + $0x38] sm:$0xf]
    %v86 = vld [vmem:[#allocation5 + $0x3c] sm:$0xf]
    %v87 = vld [vmem:[%s2] sm:$0x1]
    %v89 = vlaneseq
    %v90 = vshrl.u32 %v89, 7
    %v91 = vsub.s32 0, %v90
    %v92 = vrot.slane %v87, %v91
    %v102 = vcombine.low %v63, %v64
    %v103 = vcombine.low %v65, %v66
    %v104 = vcombine.low %v67, %v68
    %v105 = vcombine.low %v69, %v70
    %v107 = vunpack.c.l.s4 1966171168
    %v108 = vunpack.c.0.s8 %v107
    %v109 = vlaneseq
    %v110 = vshrl.u32 %v109, 7
    %v111 = vsub.s32 %v108, %v110
    %v112 = vrot.slane %v102, %v111
    %v114 = vunpack.c.l.s4 1966171168
    %v115 = vunpack.c.0.s8 %v114
    %v116 = vlaneseq
    %v117 = vshrl.u32 %v116, 7
    %v118 = vsub.s32 %v115, %v117
    %v119 = vrot.slane %v103, %v118
    %v121 = vunpack.c.l.s4 1966171168
    %v122 = vunpack.c.0.s8 %v121
    %v123 = vlaneseq
    %v124 = vshrl.u32 %v123, 7
    %v125 = vsub.s32 %v122, %v124
    %v126 = vrot.slane %v104, %v125
    %v128 = vunpack.c.l.s4 1966171168
    %v129 = vunpack.c.0.s8 %v128
    %v130 = vlaneseq
    %v131 = vshrl.u32 %v130, 7
    %v132 = vsub.s32 %v129, %v131
    %v133 = vrot.slane %v105, %v132
    %v134 = vcombine.low %v112, %v119
    %v135 = vcombine.low %v126, %v133
    %v137 = vunpack.c.l.s4 1966171168
    %v138 = vunpack.c.0.s8 %v137
    %v139 = vlaneseq
    %v140 = vshrl.u32 %v139, 7
    %v141 = vsub.s32 %v138, %v140
    %v142 = vrot.slane %v134, %v141
    %v144 = vunpack.c.l.s4 1966171168
    %v145 = vunpack.c.0.s8 %v144
    %v146 = vlaneseq
    %v147 = vshrl.u32 %v146, 7
    %v148 = vsub.s32 %v145, %v147
    %v149 = vrot.slane %v135, %v148
    %v150 = vcombine.low %v142, %v149
    %v168 = vunpack.c.l.b16 %v71
    %v169 = vunpack.c.l.b16 %v72
    %v170 = vunpack.c.l.b16 %v73
    %v171 = vunpack.c.l.b16 %v74
    %v172 = vunpack.c.l.b16 %v75
    %v173 = vunpack.c.l.b16 %v76
    %v174 = vunpack.c.l.b16 %v77
    %v175 = vunpack.c.l.b16 %v78
    %v176 = vunpack.c.l.b16 %v79
    %v177 = vunpack.c.l.b16 %v80
    %v178 = vunpack.c.l.b16 %v81
    %v179 = vunpack.c.l.b16 %v82
    %v180 = vunpack.c.l.b16 %v83
    %v181 = vunpack.c.l.b16 %v84
    %v182 = vunpack.c.l.b16 %v85
    %v183 = vunpack.c.l.b16 %v86
    %v184 = vpack.c.b16 %v169, %v168
    %v185 = vpack.c.b16 %v171, %v170
    %v186 = vpack.c.b16 %v173, %v172
    %v187 = vpack.c.b16 %v175, %v174
    %v188 = vpack.c.b16 %v177, %v176
    %v189 = vpack.c.b16 %v179, %v178
    %v190 = vpack.c.b16 %v181, %v180
    %v191 = vpack.c.b16 %v183, %v182
    %200 = vmatprep.subr.bf16.mxu0 0
    %201 = vmatpush1.bf16.msra.mxu0 %v184
    %202 = vmatprep.subr.bf16.mxu0 0
    %203 = vmatpush1.bf16.msra.mxu0 %v185
    %204 = vmatprep.subr.bf16.mxu0 0
    %205 = vmatpush1.bf16.msra.mxu0 %v186
    %206 = vmatprep.subr.bf16.mxu0 0
    %207 = vmatpush1.bf16.msra.mxu0 %v187
    %208 = vmatprep.subr.bf16.mxu0 0
    %209 = vmatpush1.bf16.msra.mxu0 %v188
    %210 = vmatprep.subr.bf16.mxu0 0
    %211 = vmatpush1.bf16.msra.mxu0 %v189
    %212 = vmatprep.subr.bf16.mxu0 0
    %213 = vmatpush1.bf16.msra.mxu0 %v190
    %214 = vmatprep.subr.bf16.mxu0 0
    %215 = vmatpush1.bf16.msra.mxu0 %v191
    %216 = vmatprep.subr.bf16.mxu0 0
    %217 = vmatpush1.bf16.msra.mxu0 0
    %218 = vmatprep.subr.bf16.mxu0 0
    %219 = vmatpush1.bf16.msra.mxu0 0
    %220 = vmatprep.subr.bf16.mxu0 0
    %221 = vmatpush1.bf16.msra.mxu0 0
    %222 = vmatprep.subr.bf16.mxu0 0
    %223 = vmatpush1.bf16.msra.mxu0 0
    %224 = vmatprep.subr.bf16.mxu0 0
    %225 = vmatpush1.bf16.msra.mxu0 0
    %226 = vmatprep.subr.bf16.mxu0 0
    %227 = vmatpush1.bf16.msra.mxu0 0
    %228 = vmatprep.subr.bf16.mxu0 0
    %229 = vmatpush1.bf16.msra.mxu0 0
    %230 = vmatprep.subr.bf16.mxu0 0
    %231 = vmatpush1.bf16.msra.mxu0 0
    %232 = vmatprep.mubr.bf16.mxu0 0
    %233 = vmatmul.mubr.bf16.gmra.mrb[0].mxu0 %v150
    %v234 = vpop.f32.mrb[0].mxu0
    %v235 = vadd.f32 %v92, %v234
    %v236 = vpop.f32.mrb[0].mxu0
    %v237 = vpop.f32.mrb[0].mxu0
    %v238 = vadd.f32 %v92, %v237
    %v239 = vpop.f32.mrb[0].mxu0
    %240 = vdwg.mxu0
    %v241 = vmax.f32 %v235, 0.0
    %v242 = vmax.f32 %v238, 0.0
    %v243 = vpack.c.bf16 %v242, %v241
    %v244 = vld [vmem:[#allocation7] sm:$0xf]
    %v245 = vld [vmem:[#allocation7 + $0x4] sm:$0xf]
    %v246 = vld [vmem:[#allocation7 + $0x8] sm:$0xf]
    %v247 = vld [vmem:[#allocation7 + $0xc] sm:$0xf]
    %v248 = vld [vmem:[#allocation7 + $0x10] sm:$0xf]
    %v249 = vld [vmem:[#allocation7 + $0x14] sm:$0xf]
    %v250 = vld [vmem:[#allocation7 + $0x18] sm:$0xf]
    %v251 = vld [vmem:[#allocation7 + $0x1c] sm:$0xf]
    %v252 = vld [vmem:[#allocation7 + $0x20] sm:$0xf]
    %v253 = vld [vmem:[#allocation7 + $0x24] sm:$0xf]
    %v254 = vld [vmem:[#allocation7 + $0x28] sm:$0xf]
    %v255 = vld [vmem:[#allocation7 + $0x2c] sm:$0xf]
    %v256 = vld [vmem:[#allocation7 + $0x30] sm:$0xf]
    %v257 = vld [vmem:[#allocation7 + $0x34] sm:$0xf]
    %v258 = vld [vmem:[#allocation7 + $0x38] sm:$0xf]
    %v259 = vld [vmem:[#allocation7 + $0x3c] sm:$0xf]
    %v260 = vld [vmem:[%s4] sm:$0x1]
    %v262 = vlaneseq
    %v263 = vshrl.u32 %v262, 7
    %v264 = vsub.s32 0, %v263
    %v265 = vrot.slane %v260, %v264
    %v283 = vunpack.c.l.b16 %v244
    %v284 = vunpack.c.l.b16 %v245
    %v285 = vunpack.c.l.b16 %v246
    %v286 = vunpack.c.l.b16 %v247
    %v287 = vunpack.c.l.b16 %v248
    %v288 = vunpack.c.l.b16 %v249
    %v289 = vunpack.c.l.b16 %v250
    %v290 = vunpack.c.l.b16 %v251
    %v291 = vunpack.c.l.b16 %v252
    %v292 = vunpack.c.l.b16 %v253
    %v293 = vunpack.c.l.b16 %v254
    %v294 = vunpack.c.l.b16 %v255
    %v295 = vunpack.c.l.b16 %v256
    %v296 = vunpack.c.l.b16 %v257
    %v297 = vunpack.c.l.b16 %v258
    %v298 = vunpack.c.l.b16 %v259
    %v299 = vpack.c.b16 %v284, %v283
    %v300 = vpack.c.b16 %v286, %v285
    %v301 = vpack.c.b16 %v288, %v287
    %v302 = vpack.c.b16 %v290, %v289
    %v303 = vpack.c.b16 %v292, %v291
    %v304 = vpack.c.b16 %v294, %v293
    %v305 = vpack.c.b16 %v296, %v295
    %v306 = vpack.c.b16 %v298, %v297
    %315 = vmatprep.subr.bf16.mxu0 0
    %316 = vmatpush1.bf16.msra.mxu0 %v299
    %317 = vmatprep.subr.bf16.mxu0 0
    %318 = vmatpush1.bf16.msra.mxu0 %v300
    %319 = vmatprep.subr.bf16.mxu0 0
    %320 = vmatpush1.bf16.msra.mxu0 %v301
    %321 = vmatprep.subr.bf16.mxu0 0
    %322 = vmatpush1.bf16.msra.mxu0 %v302
    %323 = vmatprep.subr.bf16.mxu0 0
    %324 = vmatpush1.bf16.msra.mxu0 %v303
    %325 = vmatprep.subr.bf16.mxu0 0
    %326 = vmatpush1.bf16.msra.mxu0 %v304
    %327 = vmatprep.subr.bf16.mxu0 0
    %328 = vmatpush1.bf16.msra.mxu0 %v305
    %329 = vmatprep.subr.bf16.mxu0 0
    %330 = vmatpush1.bf16.msra.mxu0 %v306
    %331 = vmatprep.subr.bf16.mxu0 0
    %332 = vmatpush1.bf16.msra.mxu0 0
    %333 = vmatprep.subr.bf16.mxu0 0
    %334 = vmatpush1.bf16.msra.mxu0 0
    %335 = vmatprep.subr.bf16.mxu0 0
    %336 = vmatpush1.bf16.msra.mxu0 0
    %337 = vmatprep.subr.bf16.mxu0 0
    %338 = vmatpush1.bf16.msra.mxu0 0
    %339 = vmatprep.subr.bf16.mxu0 0
    %340 = vmatpush1.bf16.msra.mxu0 0
    %341 = vmatprep.subr.bf16.mxu0 0
    %342 = vmatpush1.bf16.msra.mxu0 0
    %343 = vmatprep.subr.bf16.mxu0 0
    %344 = vmatpush1.bf16.msra.mxu0 0
    %345 = vmatprep.subr.bf16.mxu0 0
    %346 = vmatpush1.bf16.msra.mxu0 0
    %347 = vmatprep.mubr.bf16.mxu0 0
    %348 = vmatmul.mubr.bf16.gmra.mrb[0].mxu0 %v243
    %v349 = vpop.f32.mrb[0].mxu0
    %v350 = vadd.f32 %v265, %v349
    %v351 = vpop.f32.mrb[0].mxu0
    %v352 = vpop.f32.mrb[0].mxu0
    %v353 = vadd.f32 %v265, %v352
    %v354 = vpop.f32.mrb[0].mxu0
    %355 = vdwg.mxu0
    %356 = vst [vmem:[#allocation8] sm:$0xff] %v350
    %357 = vst [vmem:[#allocation8 + $0x8] sm:$0xff] %v353
    // Predicated region
    $region34: #{tpu_custom_call.1} parent=1 // pred_check
      _
    $region35: #{tpu_custom_call.1} parent=1 // pred_check_branch
      %359 = sbr.rel (0) target = $region37
    $region36: #{tpu_custom_call.1} parent=1 // pred_region
      %s361 = ssub.s32 256, 32
      %362 = vsyncadd [#allocation4], %s361
      %s363 = sshll.u32 [#allocation8], 4
      %s364 = int_to_ptr.vmem [resolvable:$true] %s363
      %369 = dma.vmem_to_hbm [thread:$0]  %s364, 32, %s5, [#allocation4], 32, 32, 2
    $region37: #{tpu_custom_call.1} parent=1 // pred_fallthru
      _
    // Predicated region
    $region38: #{tpu_custom_call.1} parent=1 // pred_check
      _
    $region39: #{tpu_custom_call.1} parent=1 // pred_check_branch
      %371 = sbr.rel (0) target = $region41
    $region40: #{tpu_custom_call.1} parent=1 // pred_region
      %372 = dma.done [#allocation4], 256
    $region41: #{tpu_custom_call.1} parent=1 // pred_fallthru
      _
    %373 = vsyncpa [#allocation3], 1
    %374 = vsyncpa [#allocation6], 1
    %375 = vsyncpa [#allocation4], 1

// kernel: tpu_custom_call.1
$region0: #{tpu_custom_call.1}
  #allocation0 [shape = 'u32[]', space=smem, size = 0x4, offset = 0x4, fixed_abs, tag = 'smem constant byte address 0x4 - core index']
  #allocation1 [shape = 'u32[144,128]{1,0:T(1,128)}', space=vmem, size = 0x12000, scoped, tag = 'internal scratch']
  %s0 = inlined_call_operand.hbm [shape: bf16[2,128], index: 0, kind: input, shape index: {}]
  %s1 = inlined_call_operand.hbm [shape: bf16[128,128], index: 1, kind: input, shape index: {}]
  %s2 = inlined_call_operand.vmem [shape: f32[1,128], index: 2, kind: input, shape index: {}]
  %s3 = inlined_call_operand.hbm [shape: bf16[128,128], index: 3, kind: input, shape index: {}]
  %s4 = inlined_call_operand.vmem [shape: f32[1,128], index: 4, kind: input, shape index: {}]
  %s5 = inlined_call_operand.hbm [shape: f32[2,128], index: 5, kind: output, shape index: {}]
  %s6 = sld [smem:[#allocation0]]
  $region42: #{tpu_custom_call.1} parent=0
    _
  %s8 = ssub.s32 1, %s6
  %s9 = scalar_select 0, %s8, %s6
  $region1: #{tpu_custom_call.1} parent=0
    #allocation2 [shape = 'u8[4096]{0}', space=vmem, size = 0x1000, scoped, tag = 'input window, operand 0, single buffered']
    #allocation3 [shape = 's32[1]{0}', space=sflag, size = 0x4, scoped, tag = 'scoped memory for tpu_custom_call.1']
    #allocation4 [shape = 's32[1]{0}', space=sflag, size = 0x4, scoped, tag = 'scoped memory for tpu_custom_call.1']
    #allocation5 [shape = 'u8[32768]{0}', space=vmem, size = 0x8000, scoped, tag = 'input window, operand 1, single buffered']
    #allocation6 [shape = 's32[1]{0}', space=sflag, size = 0x4, scoped, tag = 'scoped memory for tpu_custom_call.1']
    #allocation7 [shape = 'u8[32768]{0}', space=vmem, size = 0x8000, scoped, tag = 'input window, operand 3, single buffered']
    #allocation8 [shape = 'u8[8192]{0}', space=vmem, size = 0x2000, scoped, tag = 'output window, operand 0, single buffered']
    %10 = vsyncpa [#allocation3], 0
    %11 = vsyncpa [#allocation6], 0
    %12 = vsyncpa [#allocation4], 0
    // Predicated region
    $region2: #{tpu_custom_call.1} parent=1 // pred_check
      _
    $region3: #{tpu_custom_call.1} parent=1 // pred_check_branch
      %14 = sbr.rel (0) target = $region5
    $region4: #{tpu_custom_call.1} parent=1 // pred_region
      %s16 = ssub.s32 128, 16
      %17 = vsyncadd [#allocation3], %s16
      %s18 = sshll.u32 [#allocation2], 4
      %s19 = int_to_ptr.vmem [resolvable:$true] %s18
      %24 = dma.hbm_to_vmem [thread:$0]  %s0, 16, %s19, [#allocation3], 16, 16, 1
    $region5: #{tpu_custom_call.1} parent=1 // pred_fallthru
      _
    // Predicated region
    $region6: #{tpu_custom_call.1} parent=1 // pred_check
      _
    $region7: #{tpu_custom_call.1} parent=1 // pred_check_branch
      %26 = sbr.rel (0) target = $region9
    $region8: #{tpu_custom_call.1} parent=1 // pred_region
      %s28 = ssub.s32 1024, 1024
      %29 = vsyncadd [#allocation6], %s28
      %s30 = sshll.u32 [#allocation5], 4
      %s31 = int_to_ptr.vmem [resolvable:$true] %s30
      %36 = dma.hbm_to_vmem [thread:$0]  %s1, 1024, %s31, [#allocation6], 64, 64, 4
    $region9: #{tpu_custom_call.1} parent=1 // pred_fallthru
      _
    // Predicated region
    $region10: #{tpu_custom_call.1} parent=1 // pred_check
      _
    $region11: #{tpu_custom_call.1} parent=1 // pred_check_branch
      %38 = sbr.rel (0) target = $region13
    $region12: #{tpu_custom_call.1} parent=1 // pred_region
      _
    $region13: #{tpu_custom_call.1} parent=1 // pred_fallthru
      _
    // Predicated region
    $region14: #{tpu_custom_call.1} parent=1 // pred_check
      _
    $region15: #{tpu_custom_call.1} parent=1 // pred_check_branch
      %40 = sbr.rel (0) target = $region17
    $region16: #{tpu_custom_call.1} parent=1 // pred_region
      %s42 = ssub.s32 1024, 1024
      %43 = vsyncadd [#allocation6], %s42
      %s44 = sshll.u32 [#allocation7], 4
      %s45 = int_to_ptr.vmem [resolvable:$true] %s44
      %50 = dma.hbm_to_vmem [thread:$0]  %s3, 1024, %s45, [#allocation6], 64, 64, 4
    $region17: #{tpu_custom_call.1} parent=1 // pred_fallthru
      _
    // Predicated region
    $region18: #{tpu_custom_call.1} parent=1 // pred_check
      _
    $region19: #{tpu_custom_call.1} parent=1 // pred_check_branch
      %52 = sbr.rel (0) target = $region21
    $region20: #{tpu_custom_call.1} parent=1 // pred_region
      _
    $region21: #{tpu_custom_call.1} parent=1 // pred_fallthru
      _
    // Predicated region
    $region22: #{tpu_custom_call.1} parent=1 // pred_check
      _
    $region23: #{tpu_custom_call.1} parent=1 // pred_check_branch
      %54 = sbr.rel (0) target = $region25
    $region24: #{tpu_custom_call.1} parent=1 // pred_region
      %55 = dma.done [#allocation3], 128
    $region25: #{tpu_custom_call.1} parent=1 // pred_fallthru
      _
    // Predicated region
    $region26: #{tpu_custom_call.1} parent=1 // pred_check
      _
    $region27: #{tpu_custom_call.1} parent=1 // pred_check_branch
      %57 = sbr.rel (0) target = $region29
    $region28: #{tpu_custom_call.1} parent=1 // pred_region
      %58 = dma.done [#allocation6], 1024
    $region29: #{tpu_custom_call.1} parent=1 // pred_fallthru
      _
    // Predicated region
    $region30: #{tpu_custom_call.1} parent=1 // pred_check
      _
    $region31: #{tpu_custom_call.1} parent=1 // pred_check_branch
      %60 = sbr.rel (0) target = $region33
    $region32: #{tpu_custom_call.1} parent=1 // pred_region
      %61 = dma.done [#allocation6], 1024
    $region33: #{tpu_custom_call.1} parent=1 // pred_fallthru
      _
    %v63 = vld [vmem:[#allocation2] sm:$0x1]
    %v64 = vld [vmem:[#allocation2 + $0x1] sm:$0x1]
    %v65 = vld [vmem:[#allocation2 + $0x2] sm:$0x1]
    %v66 = vld [vmem:[#allocation2 + $0x3] sm:$0x1]
    %v67 = vld [vmem:[#allocation2 + $0x4] sm:$0x1]
    %v68 = vld [vmem:[#allocation2 + $0x5] sm:$0x1]
    %v69 = vld [vmem:[#allocation2 + $0x6] sm:$0x1]
    %v70 = vld [vmem:[#allocation2 + $0x7] sm:$0x1]
    %v71 = vld [vmem:[#allocation5] sm:$0xf]
    %v72 = vld [vmem:[#allocation5 + $0x4] sm:$0xf]
    %v73 = vld [vmem:[#allocation5 + $0x8] sm:$0xf]
    %v74 = vld [vmem:[#allocation5 + $0xc] sm:$0xf]
    %v75 = vld [vmem:[#allocation5 + $0x10] sm:$0xf]
    %v76 = vld [vmem:[#allocation5 + $0x14] sm:$0xf]
    %v77 = vld [vmem:[#allocation5 + $0x18] sm:$0xf]
    %v78 = vld [vmem:[#allocation5 + $0x1c] sm:$0xf]
    %v79 = vld [vmem:[#allocation5 + $0x20] sm:$0xf]
    %v80 = vld [vmem:[#allocation5 + $0x24] sm:$0xf]
    %v81 = vld [vmem:[#allocation5 + $0x28] sm:$0xf]
    %v82 = vld [vmem:[#allocation5 + $0x2c] sm:$0xf]
    %v83 = vld [vmem:[#allocation5 + $0x30] sm:$0xf]
    %v84 = vld [vmem:[#allocation5 + $0x34] sm:$0xf]
    %v85 = vld [vmem:[#allocation5 + $0x38] sm:$0xf]
    %v86 = vld [vmem:[#allocation5 + $0x3c] sm:$0xf]
    %v87 = vld [vmem:[%s2] sm:$0x1]
    %v89 = vlaneseq
    %v90 = vshrl.u32 %v89, 7
    %v91 = vsub.s32 0, %v90
    %v92 = vrot.slane %v87, %v91
    %v102 = vcombine.low %v63, %v64
    %v103 = vcombine.low %v65, %v66
    %v104 = vcombine.low %v67, %v68
    %v105 = vcombine.low %v69, %v70
    %v107 = vunpack.c.l.s4 1966171168
    %v108 = vunpack.c.0.s8 %v107
    %v109 = vlaneseq
    %v110 = vshrl.u32 %v109, 7
    %v111 = vsub.s32 %v108, %v110
    %v112 = vrot.slane %v102, %v111
    %v114 = vunpack.c.l.s4 1966171168
    %v115 = vunpack.c.0.s8 %v114
    %v116 = vlaneseq
    %v117 = vshrl.u32 %v116, 7
    %v118 = vsub.s32 %v115, %v117
    %v119 = vrot.slane %v103, %v118
    %v121 = vunpack.c.l.s4 1966171168
    %v122 = vunpack.c.0.s8 %v121
    %v123 = vlaneseq
    %v124 = vshrl.u32 %v123, 7
    %v125 = vsub.s32 %v122, %v124
    %v126 = vrot.slane %v104, %v125
    %v128 = vunpack.c.l.s4 1966171168
    %v129 = vunpack.c.0.s8 %v128
    %v130 = vlaneseq
    %v131 = vshrl.u32 %v130, 7
    %v132 = vsub.s32 %v129, %v131
    %v133 = vrot.slane %v105, %v132
    %v134 = vcombine.low %v112, %v119
    %v135 = vcombine.low %v126, %v133
    %v137 = vunpack.c.l.s4 1966171168
    %v138 = vunpack.c.0.s8 %v137
    %v139 = vlaneseq
    %v140 = vshrl.u32 %v139, 7
    %v141 = vsub.s32 %v138, %v140
    %v142 = vrot.slane %v134, %v141
    %v144 = vunpack.c.l.s4 1966171168
    %v145 = vunpack.c.0.s8 %v144
    %v146 = vlaneseq
    %v147 = vshrl.u32 %v146, 7
    %v148 = vsub.s32 %v145, %v147
    %v149 = vrot.slane %v135, %v148
    %v150 = vcombine.low %v142, %v149
    %v168 = vunpack.c.l.b16 %v71
    %v169 = vunpack.c.l.b16 %v72
    %v170 = vunpack.c.l.b16 %v73
    %v171 = vunpack.c.l.b16 %v74
    %v172 = vunpack.c.l.b16 %v75
    %v173 = vunpack.c.l.b16 %v76
    %v174 = vunpack.c.l.b16 %v77
    %v175 = vunpack.c.l.b16 %v78
    %v176 = vunpack.c.l.b16 %v79
    %v177 = vunpack.c.l.b16 %v80
    %v178 = vunpack.c.l.b16 %v81
    %v179 = vunpack.c.l.b16 %v82
    %v180 = vunpack.c.l.b16 %v83
    %v181 = vunpack.c.l.b16 %v84
    %v182 = vunpack.c.l.b16 %v85
    %v183 = vunpack.c.l.b16 %v86
    %v184 = vpack.c.b16 %v169, %v168
    %v185 = vpack.c.b16 %v171, %v170
    %v186 = vpack.c.b16 %v173, %v172
    %v187 = vpack.c.b16 %v175, %v174
    %v188 = vpack.c.b16 %v177, %v176
    %v189 = vpack.c.b16 %v179, %v178
    %v190 = vpack.c.b16 %v181, %v180
    %v191 = vpack.c.b16 %v183, %v182
    %200 = vmatprep.subr.bf16.mxu0 0
    %201 = vmatpush1.bf16.msra.mxu0 %v184
    %202 = vmatprep.subr.bf16.mxu0 0
    %203 = vmatpush1.bf16.msra.mxu0 %v185
    %204 = vmatprep.subr.bf16.mxu0 0
    %205 = vmatpush1.bf16.msra.mxu0 %v186
    %206 = vmatprep.subr.bf16.mxu0 0
    %207 = vmatpush1.bf16.msra.mxu0 %v187
    %208 = vmatprep.subr.bf16.mxu0 0
    %209 = vmatpush1.bf16.msra.mxu0 %v188
    %210 = vmatprep.subr.bf16.mxu0 0
    %211 = vmatpush1.bf16.msra.mxu0 %v189
    %212 = vmatprep.subr.bf16.mxu0 0
    %213 = vmatpush1.bf16.msra.mxu0 %v190
    %214 = vmatprep.subr.bf16.mxu0 0
    %215 = vmatpush1.bf16.msra.mxu0 %v191
    %216 = vmatprep.subr.bf16.mxu0 0
    %217 = vmatpush1.bf16.msra.mxu0 0
    %218 = vmatprep.subr.bf16.mxu0 0
    %219 = vmatpush1.bf16.msra.mxu0 0
    %220 = vmatprep.subr.bf16.mxu0 0
    %221 = vmatpush1.bf16.msra.mxu0 0
    %222 = vmatprep.subr.bf16.mxu0 0
    %223 = vmatpush1.bf16.msra.mxu0 0
    %224 = vmatprep.subr.bf16.mxu0 0
    %225 = vmatpush1.bf16.msra.mxu0 0
    %226 = vmatprep.subr.bf16.mxu0 0
    %227 = vmatpush1.bf16.msra.mxu0 0
    %228 = vmatprep.subr.bf16.mxu0 0
    %229 = vmatpush1.bf16.msra.mxu0 0
    %230 = vmatprep.subr.bf16.mxu0 0
    %231 = vmatpush1.bf16.msra.mxu0 0
    %232 = vmatprep.mubr.bf16.mxu0 0
    %233 = vmatmul.mubr.bf16.gmra.mrb[0].mxu0 %v150
    %v234 = vpop.f32.mrb[0].mxu0
    %v235 = vadd.f32 %v92, %v234
    %v236 = vpop.f32.mrb[0].mxu0
    %v237 = vpop.f32.mrb[0].mxu0
    %v238 = vadd.f32 %v92, %v237
    %v239 = vpop.f32.mrb[0].mxu0
    %240 = vdwg.mxu0
    %v241 = vmax.f32 %v235, 0.0
    %v242 = vmax.f32 %v238, 0.0
    %v243 = vpack.c.bf16 %v242, %v241
    %v244 = vld [vmem:[#allocation7] sm:$0xf]
    %v245 = vld [vmem:[#allocation7 + $0x4] sm:$0xf]
    %v246 = vld [vmem:[#allocation7 + $0x8] sm:$0xf]
    %v247 = vld [vmem:[#allocation7 + $0xc] sm:$0xf]
    %v248 = vld [vmem:[#allocation7 + $0x10] sm:$0xf]
    %v249 = vld [vmem:[#allocation7 + $0x14] sm:$0xf]
    %v250 = vld [vmem:[#allocation7 + $0x18] sm:$0xf]
    %v251 = vld [vmem:[#allocation7 + $0x1c] sm:$0xf]
    %v252 = vld [vmem:[#allocation7 + $0x20] sm:$0xf]
    %v253 = vld [vmem:[#allocation7 + $0x24] sm:$0xf]
    %v254 = vld [vmem:[#allocation7 + $0x28] sm:$0xf]
    %v255 = vld [vmem:[#allocation7 + $0x2c] sm:$0xf]
    %v256 = vld [vmem:[#allocation7 + $0x30] sm:$0xf]
    %v257 = vld [vmem:[#allocation7 + $0x34] sm:$0xf]
    %v258 = vld [vmem:[#allocation7 + $0x38] sm:$0xf]
    %v259 = vld [vmem:[#allocation7 + $0x3c] sm:$0xf]
    %v260 = vld [vmem:[%s4] sm:$0x1]
    %v262 = vlaneseq
    %v263 = vshrl.u32 %v262, 7
    %v264 = vsub.s32 0, %v263
    %v265 = vrot.slane %v260, %v264
    %v283 = vunpack.c.l.b16 %v244
    %v284 = vunpack.c.l.b16 %v245
    %v285 = vunpack.c.l.b16 %v246
    %v286 = vunpack.c.l.b16 %v247
    %v287 = vunpack.c.l.b16 %v248
    %v288 = vunpack.c.l.b16 %v249
    %v289 = vunpack.c.l.b16 %v250
    %v290 = vunpack.c.l.b16 %v251
    %v291 = vunpack.c.l.b16 %v252
    %v292 = vunpack.c.l.b16 %v253
    %v293 = vunpack.c.l.b16 %v254
    %v294 = vunpack.c.l.b16 %v255
    %v295 = vunpack.c.l.b16 %v256
    %v296 = vunpack.c.l.b16 %v257
    %v297 = vunpack.c.l.b16 %v258
    %v298 = vunpack.c.l.b16 %v259
    %v299 = vpack.c.b16 %v284, %v283
    %v300 = vpack.c.b16 %v286, %v285
    %v301 = vpack.c.b16 %v288, %v287
    %v302 = vpack.c.b16 %v290, %v289
    %v303 = vpack.c.b16 %v292, %v291
    %v304 = vpack.c.b16 %v294, %v293
    %v305 = vpack.c.b16 %v296, %v295
    %v306 = vpack.c.b16 %v298, %v297
    %315 = vmatprep.subr.bf16.mxu0 0
    %316 = vmatpush1.bf16.msra.mxu0 %v299
    %317 = vmatprep.subr.bf16.mxu0 0
    %318 = vmatpush1.bf16.msra.mxu0 %v300
    %319 = vmatprep.subr.bf16.mxu0 0
    %320 = vmatpush1.bf16.msra.mxu0 %v301
    %321 = vmatprep.subr.bf16.mxu0 0
    %322 = vmatpush1.bf16.msra.mxu0 %v302
    %323 = vmatprep.subr.bf16.mxu0 0
    %324 = vmatpush1.bf16.msra.mxu0 %v303
    %325 = vmatprep.subr.bf16.mxu0 0
    %326 = vmatpush1.bf16.msra.mxu0 %v304
    %327 = vmatprep.subr.bf16.mxu0 0
    %328 = vmatpush1.bf16.msra.mxu0 %v305
    %329 = vmatprep.subr.bf16.mxu0 0
    %330 = vmatpush1.bf16.msra.mxu0 %v306
    %331 = vmatprep.subr.bf16.mxu0 0
    %332 = vmatpush1.bf16.msra.mxu0 0
    %333 = vmatprep.subr.bf16.mxu0 0
    %334 = vmatpush1.bf16.msra.mxu0 0
    %335 = vmatprep.subr.bf16.mxu0 0
    %336 = vmatpush1.bf16.msra.mxu0 0
    %337 = vmatprep.subr.bf16.mxu0 0
    %338 = vmatpush1.bf16.msra.mxu0 0
    %339 = vmatprep.subr.bf16.mxu0 0
    %340 = vmatpush1.bf16.msra.mxu0 0
    %341 = vmatprep.subr.bf16.mxu0 0
    %342 = vmatpush1.bf16.msra.mxu0 0
    %343 = vmatprep.subr.bf16.mxu0 0
    %344 = vmatpush1.bf16.msra.mxu0 0
    %345 = vmatprep.subr.bf16.mxu0 0
    %346 = vmatpush1.bf16.msra.mxu0 0
    %347 = vmatprep.mubr.bf16.mxu0 0
    %348 = vmatmul.mubr.bf16.gmra.mrb[0].mxu0 %v243
    %v349 = vpop.f32.mrb[0].mxu0
    %v350 = vadd.f32 %v265, %v349
    %v351 = vpop.f32.mrb[0].mxu0
    %v352 = vpop.f32.mrb[0].mxu0
    %v353 = vadd.f32 %v265, %v352
    %v354 = vpop.f32.mrb[0].mxu0
    %355 = vdwg.mxu0
    %356 = vst [vmem:[#allocation8] sm:$0xff] %v350
    %357 = vst [vmem:[#allocation8 + $0x8] sm:$0xff] %v353
    // Predicated region
    $region34: #{tpu_custom_call.1} parent=1 // pred_check
      _
    $region35: #{tpu_custom_call.1} parent=1 // pred_check_branch
      %359 = sbr.rel (0) target = $region37
    $region36: #{tpu_custom_call.1} parent=1 // pred_region
      %s361 = ssub.s32 256, 32
      %362 = vsyncadd [#allocation4], %s361
      %s363 = sshll.u32 [#allocation8], 4
      %s364 = int_to_ptr.vmem [resolvable:$true] %s363
      %369 = dma.vmem_to_hbm [thread:$0]  %s364, 32, %s5, [#allocation4], 32, 32, 2
    $region37: #{tpu_custom_call.1} parent=1 // pred_fallthru
      _
    // Predicated region
    $region38: #{tpu_custom_call.1} parent=1 // pred_check
      _
    $region39: #{tpu_custom_call.1} parent=1 // pred_check_branch
      %371 = sbr.rel (0) target = $region41
    $region40: #{tpu_custom_call.1} parent=1 // pred_region
      %372 = dma.done [#allocation4], 256
    $region41: #{tpu_custom_call.1} parent=1 // pred_fallthru
      _
    %373 = vsyncpa [#allocation3], 1
    %374 = vsyncpa [#allocation6], 1
    %375 = vsyncpa [#allocation4], 1

</llo_original>
